<compile_context>
chip_gen: v7x
topology: tpu7x:2x2x1
jax: 0.10.0
libtpu: 0.0.40
codegen_flags: <defaults>
</compile_context>

<pallas_src>
import functools

import jax
import jax.numpy as jnp
from jax import lax
from jax.experimental import pallas as pl
from jax.experimental.pallas import tpu as pltpu

C1 = 0.01 ** 2
C2 = 0.03 ** 2


# ---------------------------------------------------------------------------
# pltpu.roll direction probe (cached; one tiny eager compile on first call).
# ---------------------------------------------------------------------------
@functools.lru_cache(maxsize=1)
def _roll_is_forward():
    """True  <=>  pltpu.roll(x, +1, axis) has np.roll semantics
    (out[j] = in[j-1]), measured once on-device.  Must be called outside jit
    (photometric_loss below is a plain Python wrapper, so this is fine)."""
    def probe(x_ref, o_ref):
        o_ref[...] = pltpu.roll(x_ref[...], shift=1, axis=1)

    x = lax.broadcasted_iota(jnp.float32, (8, 128), 1)
    y = pl.pallas_call(
        probe, out_shape=jax.ShapeDtypeStruct((8, 128), jnp.float32))(x)
    return bool(jax.device_get(y[0, 1]) == 0.0)


def _roll_prev(a, axis, fwd):
    """Cyclic 'previous element': out[..., j, ...] = a[..., j-1, ...]."""
    n = a.shape[axis]
    return pltpu.roll(a, shift=1 if fwd else n - 1, axis=axis)


def _roll_next(a, axis, fwd):
    """Cyclic 'next element': out[..., j, ...] = a[..., j+1, ...]."""
    n = a.shape[axis]
    return pltpu.roll(a, shift=n - 1 if fwd else 1, axis=axis)


# ---------------------------------------------------------------------------
# kernel
# ---------------------------------------------------------------------------
def _photometric_kernel(x_ref, y_ref, halo_ref, out_ref, *,
                        roll_fwd, w_valid, newton):
    f32 = jnp.float32
    x = x_ref[...].astype(f32)          # (C, TH, Wp)   pred tile
    y = y_ref[...].astype(f32)          # (C, TH, Wp)   target tile
    halo = halo_ref[...].astype(f32)    # (2, 2, C, Wp) [pred/targ][above/below]
    hp = halo[0]                        # (2, C, Wp)
    ht = halo[1]                        # (2, C, Wp)

    C, TH, Wp = x.shape

    # ---- hoisted, narrow edge masks (broadcast only over leading dims) ------
    col_t = lax.broadcasted_iota(jnp.int32, (1, TH, Wp), 2)
    first_t = col_t == 0
    last_t = col_t == (w_valid - 1)
    row_t = lax.broadcasted_iota(jnp.int32, (1, TH, Wp), 1)
    top_t = row_t == 0
    bot_t = row_t == (TH - 1)
    col_h = lax.broadcasted_iota(jnp.int32, (1, C, Wp), 2)
    first_h = col_h == 0
    last_h = col_h == (w_valid - 1)

    # ---- horizontal 1x3 sums with in-kernel W reflection (separable pool) ---
    def hsum5(a, b, first, last):
        """1x3 reflective horizontal sums of (a, b, a*a, b*b, a*b)."""
        axis = a.ndim - 1
        a_l = _roll_prev(a, axis, roll_fwd)
        a_r = _roll_next(a, axis, roll_fwd)
        b_l = _roll_prev(b, axis, roll_fwd)
        b_r = _roll_next(b, axis, roll_fwd)
        # ReflectionPad2d(1) on W: col -1 -> col 1, col W -> col W-2.
        al = jnp.where(first, a_r, a_l)
        ar = jnp.where(last, a_l, a_r)
        bl = jnp.where(first, b_r, b_l)
        br = jnp.where(last, b_l, b_r)
        ha = a + al + ar
        hb = b + bl + br
        haa = a * a + al * al + ar * ar
        hbb = b * b + bl * bl + br * br
        hab = a * b + al * bl + ar * br
        return ha, hb, haa, hbb, hab

    hx, hy, hxx, hyy, hxy = hsum5(x, y, first_t, last_t)     # (C, TH, Wp)
    gx, gy, gxx, gyy, gxy = hsum5(hp, ht, first_h, last_h)   # (2, C, Wp)

    # ---- vertical 3x1 sums; halo rows provide the H reflection / neighbours -
    def vsum(h, g):
        up = _roll_prev(h, 1, roll_fwd)                       # h[:, r-1, :] cyclic
        dn = _roll_next(h, 1, roll_fwd)                       # h[:, r+1, :] cyclic
        up = jnp.where(top_t, g[0][:, None, :], up)           # implicit broadcast
        dn = jnp.where(bot_t, g[1][:, None, :], dn)
        return h + up + dn

    s_x = vsum(hx, gx)
    s_y = vsum(hy, gy)
    s_xx = vsum(hxx, gxx)
    s_yy = vsum(hyy, gyy)
    s_xy = vsum(hxy, gxy)

    # ---- SSIM in the unnormalised (x9 window-sum) domain ---------------------
    # mu = S/9, sigma = (9*S2 - S^2)/81  =>  the 1/81^2 factors cancel in n/d.
    c1s = jnp.float32(81.0 * C1)
    c2s = jnp.float32(81.0 * C2)
    sxsy = s_x * s_y
    sx2 = s_x * s_x
    sy2 = s_y * s_y
    two_sxsy = sxsy + sxsy
    musq = sx2 + sy2
    ssim_n = (two_sxsy + c1s) * (18.0 * s_xy - two_sxsy + c2s)
    ssim_d = (musq + c1s) * (9.0 * (s_xx + s_yy) - musq + c2s)
    # EUP approximate reciprocal (+ optional Newton step for ~f32 accuracy).
    # ssim_d >= (81*C1)*(81*C2) > 0, so the reciprocal is well conditioned.
    inv_d = pl.reciprocal(ssim_d, approx=True)
    if newton:
        inv_d = inv_d * (2.0 - ssim_d * inv_d)
    ssim = jnp.clip((1.0 - ssim_n * inv_d) * 0.5, 0.0, 1.0)

    # ---- L1 + blend (channel mean) -------------------------------------------
    l1 = jnp.abs(y - x)
    inv_c = jnp.float32(1.0 / C)
    ssim_loss = jnp.sum(ssim, axis=0, keepdims=True) * inv_c   # (1, TH, Wp)
    l1_loss = jnp.sum(l1, axis=0, keepdims=True) * inv_c

    out_ref[...] = (0.85 * ssim_loss + 0.15 * l1_loss).astype(out_ref.dtype)


# ---------------------------------------------------------------------------
# tiling / wrapper
# ---------------------------------------------------------------------------
def _vmem_capacity_bytes():
    try:
        return int(pltpu.get_tpu_info().vmem_capacity_bytes)
    except Exception:
        return 128 * 1024 * 1024   # v5e/v6e physical VMEM fallback


def _legal_tile_heights(H):
    """Multiple-of-8 divisors of H (ascending); [] if none."""
    return [th for th in range(8, H + 1, 8) if H % th == 0]


def _choose_tiling(B, C, H, Wp, in_itemsize, tile_h):
    """Pick (TH, vmem_limit_bytes), generation-aware.

    Targets total live footprint ~ half of the scoped-VMEM limit we request
    (v7x: 64 MiB physical VMEM; v5e/v6e: 128 MiB), picks the largest fitting
    TH to minimise per-grid-step overhead, degrades to the smallest legal TH
    if nothing fits, and guarantees >= 2 grid programs when B == 1 so v7x's
    two TensorCores both get work."""
    cap = _vmem_capacity_bytes()
    vmem_limit = min((cap * 3) // 4, 96 * 1024 * 1024)
    budget = vmem_limit // 2

    if tile_h is not None:
        return tile_h, vmem_limit

    def footprint(th):
        tile_f32 = C * th * Wp * 4
        live = 18 * tile_f32                        # live f32 temporaries
        dbuf = 2 * 2 * C * th * Wp * in_itemsize    # 2 inputs x double-buffer
        outb = 2 * th * Wp * 4                      # output double-buffer
        halo = 2 * 2 * 2 * C * Wp * 4               # merged halo (tiny)
        return live + dbuf + outb + halo

    legal = _legal_tile_heights(H)
    if not legal:
        # TODO(synk): add a W-tiling path (1-column halo) for heights with no
        # multiple-of-8 divisor whose full-image tile exceeds the budget.
        return H, vmem_limit

    fitting = [th for th in legal if footprint(th) <= budget]
    th = max(fitting) if fitting else min(legal)    # degrade, never blow up

    if B == 1 and th == H:
        smaller = [t for t in legal if t <= H // 2]
        if smaller:
            th = max(smaller)                       # >= 2 programs for 2 TCs
    return th, vmem_limit


def photometric_loss(pred, target, *, tile_h=None, newton_reciprocal=True):
    """pred, target: (B, C, H, W) -> (B, 1, H, W) float32 reprojection loss
    (0.85 * SSIM + 0.15 * L1, matching PhotometricLoss.forward).  The SSIM
    divide uses the EUP approximate reciprocal (plus one Newton step by
    default); it is not bit-exact vs a true divide."""
    assert pred.shape == target.shape
    B, C, H, W = pred.shape
    assert H >= 2 and W >= 2, "ReflectionPad2d(1) requires H, W >= 2"

    # Lane-dense layout: pad W to a multiple of 128.  Padded columns are never
    # read across the reflection boundary (masks use w_valid=W) and cropped.
    Wp = W if W % 128 == 0 else ((W + 127) // 128) * 128
    if Wp != W:
        pad = ((0, 0), (0, 0), (0, 0), (0, Wp - W))
        pred_p = jnp.pad(pred, pad)
        target_p = jnp.pad(target, pad)
    else:
        pred_p, target_p = pred, target

    in_itemsize = jnp.dtype(pred.dtype).itemsize
    TH, vmem_limit = _choose_tiling(B, C, H, Wp, in_itemsize, tile_h)
    assert H % TH == 0
    nH = H // TH

    roll_fwd = _roll_is_forward()

    # Per-tile vertical halo rows (1 above + 1 below), H-reflection folded in,
    # merged for pred & target: (B*nH, 2[src], 2[above/below], C, Wp).  Tiny.
    tiles = jnp.arange(nH)
    top_idx = jnp.where(tiles == 0, 1, tiles * TH - 1)
    bot_idx = jnp.where(tiles == nH - 1, H - 2, (tiles + 1) * TH)

    def make_halo(img):
        top = img[:, :, top_idx, :]                   # (B, C, nH, Wp)
        bot = img[:, :, bot_idx, :]                   # (B, C, nH, Wp)
        h = jnp.stack([top, bot], axis=3)             # (B, C, nH, 2, Wp)
        h = jnp.transpose(h, (0, 2, 3, 1, 4))         # (B, nH, 2, C, Wp)
        return h.reshape(B * nH, 2, C, Wp)

    halo = jnp.stack([make_halo(pred_p), make_halo(target_p)], axis=1)

    kernel = functools.partial(_photometric_kernel, roll_fwd=roll_fwd,
                               w_valid=W, newton=newton_reciprocal)

    out = pl.pallas_call(
        kernel,
        out_shape=jax.ShapeDtypeStruct((B, 1, H, Wp), jnp.float32),
        grid=(B, nH),
        in_specs=[
            pl.BlockSpec((pl.Squeezed(), C, TH, Wp), lambda b, i: (b, 0, i, 0)),
            pl.BlockSpec((pl.Squeezed(), C, TH, Wp), lambda b, i: (b, 0, i, 0)),
            pl.BlockSpec((pl.Squeezed(), 2, 2, C, Wp),
                         lambda b, i: (b * nH + i, 0, 0, 0, 0)),
        ],
        out_specs=pl.BlockSpec((pl.Squeezed(), 1, TH, Wp),
                               lambda b, i: (b, 0, i, 0)),
        compiler_params=pltpu.CompilerParams(
            dimension_semantics=("parallel", "parallel"),
            vmem_limit_bytes=int(vmem_limit),
        ),
    )(pred_p, target_p, halo)

    return out if Wp == W else out[..., :W]


# ---------------- pure-JAX reference (for correctness check) ----------------
def _photometric_ref(pred, target):
    def pool3(a_pad):
        B, C, Hp, Wpp = a_pad.shape
        H, W = Hp - 2, Wpp - 2
        s = jnp.zeros((B, C, H, W), jnp.float32)
        for dh in range(3):
            for dw in range(3):
                s = s + a_pad[:, :, dh:dh + H, dw:dw + W]
        return s / 9.0

    xp = jnp.pad(pred, ((0, 0), (0, 0), (1, 1), (1, 1)), mode="reflect")
    yp = jnp.pad(target, ((0, 0), (0, 0), (1, 1), (1, 1)), mode="reflect")
    mu_x, mu_y = pool3(xp), pool3(yp)
    sigma_x = pool3(xp * xp) - mu_x ** 2
    sigma_y = pool3(yp * yp) - mu_y ** 2
    sigma_xy = pool3(xp * yp) - mu_x * mu_y
    n = (2 * mu_x * mu_y + C1) * (2 * sigma_xy + C2)
    d = (mu_x ** 2 + mu_y ** 2 + C1) * (sigma_x + sigma_y + C2)
    ssim = jnp.clip((1 - n / d) / 2, 0.0, 1.0)
    l1 = jnp.abs(target - pred).mean(axis=1, keepdims=True)
    return 0.85 * ssim.mean(axis=1, keepdims=True) + 0.15 * l1


if __name__ == "__main__":
    key = jax.random.PRNGKey(0)
    k1, k2 = jax.random.split(key)
    B, C, H, W = 2, 3, 16, 16
    pred = jax.random.uniform(k1, (B, C, H, W), dtype=jnp.float32)
    target = jax.random.uniform(k2, (B, C, H, W), dtype=jnp.float32)

    ref = _photometric_ref(pred, target)

    # default (auto-chosen) tiling
    out = jax.block_until_ready(photometric_loss(pred, target))
    assert out.shape == (B, 1, H, W)
    assert bool(jnp.allclose(out, ref, atol=1e-3, rtol=1e-3)), float(
        jnp.max(jnp.abs(out - ref)))

    # forced multi-tile (halo) path
    out2 = jax.block_until_ready(photometric_loss(pred, target, tile_h=8))
    assert bool(jnp.allclose(out2, ref, atol=1e-3, rtol=1e-3)), float(
        jnp.max(jnp.abs(out2 - ref)))

    # B == 1 path (auto-forces >= 2 grid programs for the v7x 2-TC case)
    out3 = jax.block_until_ready(photometric_loss(pred[:1], target[:1]))
    assert bool(jnp.allclose(out3, ref[:1], atol=1e-3, rtol=1e-3)), float(
        jnp.max(jnp.abs(out3 - ref[:1])))

    print("KERNEL_OK")
</pallas_src>

<mosaic_0001>
module attributes {stable_mosaic.version = 11 : i64} {
  func.func @probe(%arg0: memref<8x128xf32, #tpu.memory_space<vmem>>, %arg1: memref<8x128xf32, #tpu.memory_space<vmem>>) attributes {dimension_semantics = [], scalar_prefetch = 0 : i64, scratch_operands = 0 : i64, tpu.core_type = #tpu.core_type<tc>} {
    %c0 = arith.constant 0 : index
    %c0_0 = arith.constant 0 : index
    %0 = vector.load %arg0[%c0, %c0_0] : memref<8x128xf32, #tpu.memory_space<vmem>>, vector<8x128xf32>
    %c1_i32 = arith.constant 1 : i32
    %1 = tpu.dynamic_rotate %0 by %c1_i32 dim 1 : vector<8x128xf32>, i32 -> vector<8x128xf32>
    %c0_1 = arith.constant 0 : index
    %c0_2 = arith.constant 0 : index
    %2 = vector.load %arg1[%c0_1, %c0_2] : memref<8x128xf32, #tpu.memory_space<vmem>>, vector<8x128xf32>
    tpu.vector_store %arg1[%c0_1, %c0_2], %1 {strides = array<i32>} : memref<8x128xf32, #tpu.memory_space<vmem>>, vector<8x128xf32>,
    return
  }
}

</mosaic_0001>

<llo_original>
// kernel: tpu_custom_call.1
$region0: #{tpu_custom_call.1}
  #allocation0 [shape = 'u32[]', space=smem, size = 0x4, offset = 0x4, fixed_abs, tag = 'smem constant byte address 0x4 - core index']
  #allocation1 [shape = 'u32[144,128]{1,0:T(1,128)}', space=vmem, size = 0x12000, scoped, tag = 'internal scratch']
  %s0 = inlined_call_operand.hbm [shape: f32[8,128], index: 0, kind: input, shape index: {}]
  %s1 = inlined_call_operand.hbm [shape: f32[8,128], index: 1, kind: output, shape index: {}]
  %s2 = sld [smem:[#allocation0]]
  $region18: #{tpu_custom_call.1} parent=0
    _
  %s4 = ssub.s32 1, %s2
  %s5 = scalar_select 0, %s4, %s2
  $region1: #{tpu_custom_call.1} parent=0
    #allocation2 [shape = 'u8[4096]{0}', space=vmem, size = 0x1000, scoped, tag = 'input window, operand 0, single buffered']
    #allocation3 [shape = 's32[1]{0}', space=sflag, size = 0x4, scoped, tag = 'scoped memory for tpu_custom_call.1']
    #allocation4 [shape = 's32[1]{0}', space=sflag, size = 0x4, scoped, tag = 'scoped memory for tpu_custom_call.1']
    #allocation5 [shape = 'u8[4096]{0}', space=vmem, size = 0x1000, scoped, tag = 'output window, operand 0, single buffered']
    %6 = vsyncpa [#allocation3], 0
    %7 = vsyncpa [#allocation4], 0
    // Predicated region
    $region2: #{tpu_custom_call.1} parent=1 // pred_check
      _
    $region3: #{tpu_custom_call.1} parent=1 // pred_check_branch
      %9 = sbr.rel (0) target = $region5
    $region4: #{tpu_custom_call.1} parent=1 // pred_region
      %s11 = ssub.s32 128, 128
      %12 = vsyncadd [#allocation3], %s11
      %s14 = sshll.u32 [#allocation2], 4
      %s15 = int_to_ptr.vmem [resolvable:$true] %s14
      %17 = dma.hbm_to_vmem [thread:$0]  %s0, 128, %s15, [#allocation3]
    $region5: #{tpu_custom_call.1} parent=1 // pred_fallthru
      _
    // Predicated region
    $region6: #{tpu_custom_call.1} parent=1 // pred_check
      _
    $region7: #{tpu_custom_call.1} parent=1 // pred_check_branch
      %19 = sbr.rel (0) target = $region9
    $region8: #{tpu_custom_call.1} parent=1 // pred_region
      %20 = dma.done [#allocation3], 128
    $region9: #{tpu_custom_call.1} parent=1 // pred_fallthru
      _
    %v21 = vld [vmem:[#allocation2] sm:$0xff]
    %22 = vrot.lane.b32.xlu0 %v21, 1
    %v23 = vpop.permute.xlu0 %22
    %24 = vst [vmem:[#allocation5] sm:$0xff] %v23
    // Predicated region
    $region10: #{tpu_custom_call.1} parent=1 // pred_check
      _
    $region11: #{tpu_custom_call.1} parent=1 // pred_check_branch
      %26 = sbr.rel (0) target = $region13
    $region12: #{tpu_custom_call.1} parent=1 // pred_region
      %s28 = ssub.s32 128, 128
      %29 = vsyncadd [#allocation4], %s28
      %s31 = sshll.u32 [#allocation5], 4
      %s32 = int_to_ptr.vmem [resolvable:$true] %s31
      %34 = dma.vmem_to_hbm [thread:$0]  %s32, 128, %s1, [#allocation4]
    $region13: #{tpu_custom_call.1} parent=1 // pred_fallthru
      _
    // Predicated region
    $region14: #{tpu_custom_call.1} parent=1 // pred_check
      _
    $region15: #{tpu_custom_call.1} parent=1 // pred_check_branch
      %36 = sbr.rel (0) target = $region17
    $region16: #{tpu_custom_call.1} parent=1 // pred_region
      %37 = dma.done [#allocation4], 128
    $region17: #{tpu_custom_call.1} parent=1 // pred_fallthru
      _
    %38 = vsyncpa [#allocation3], 1
    %39 = vsyncpa [#allocation4], 1

</llo_original>
